<compile_context>
chip_gen: v6e
topology: v6e:2x2x1
jax: 0.10.0
libtpu: 0.0.40
codegen_flags: <defaults>
</compile_context>

<pallas_src>
import functools

import jax
import jax.numpy as jnp
from jax.experimental import pallas as pl
from jax.experimental.pallas import tpu as pltpu

_LANE = 128
_WIDE_COLS = 1024
_TARGET_BLOCK_BYTES = 2 * 1024 * 1024  # ~2 MiB per block

_INT28_MIN = -134217728
_INT28_MAX = 134217727


def _saturate_kernel(x_ref, o_ref, *, v_l, quantized):
    x = x_ref[...]
    out = jnp.maximum(x, jnp.asarray(v_l, dtype=x.dtype))
    if quantized:
        out = jnp.clip(out,
                       jnp.asarray(_INT28_MIN, dtype=x.dtype),
                       jnp.asarray(_INT28_MAX, dtype=x.dtype))
    o_ref[...] = out


def _clamp_jnp(x, v_l, quantized):
    out = jnp.maximum(x, jnp.asarray(v_l, dtype=x.dtype))
    if quantized:
        out = jnp.clip(out,
                       jnp.asarray(_INT28_MIN, dtype=x.dtype),
                       jnp.asarray(_INT28_MAX, dtype=x.dtype))
    return out


def _plan_tiling(n, itemsize):
    """Static tiling plan -> (cols, block_rows), or None for tiny inputs."""
    if n < 8 * _LANE:
        return None  # smaller than one minimal (8,128) tile -> pure jnp path
    # Lane-dense wide columns when the element count allows.
    cols = _WIDE_COLS if n >= 8 * _WIDE_COLS else _LANE
    rows_total = n // cols
    target_rows = max(8, _TARGET_BLOCK_BYTES // (cols * itemsize))
    block_rows = min(target_rows, rows_total)
    if rows_total >= 16:
        # Ensure >= 2 grid steps so v7x's two TensorCores both get work.
        block_rows = min(block_rows, rows_total // 2)
    # Round down to a sublane-packing multiple (32 covers f32/bf16/int8).
    mult = 32 if block_rows >= 32 else 8
    block_rows = max(8, (block_rows // mult) * mult)
    return cols, block_rows


def _saturate_blocks(x2d, v_l, quantized, block_rows, cols):
    rows = x2d.shape[0]
    assert rows % block_rows == 0 and x2d.shape[1] == cols
    kernel = functools.partial(_saturate_kernel, v_l=v_l, quantized=quantized)
    return pl.pallas_call(
        kernel,
        out_shape=jax.ShapeDtypeStruct(x2d.shape, x2d.dtype),
        grid_spec=pltpu.PrefetchScalarGridSpec(
            num_scalar_prefetch=0,
            grid=(rows // block_rows,),
            in_specs=[pl.BlockSpec((block_rows, cols), lambda i: (i, 0))],
            out_specs=pl.BlockSpec((block_rows, cols), lambda i: (i, 0)),
        ),
        compiler_params=pltpu.CompilerParams(
            dimension_semantics=("parallel",)),
    )(x2d)


@functools.partial(jax.jit, static_argnums=(1, 2))
def _saturate_forward(x, v_l, quantized):
    flat = x.reshape(-1)
    n = flat.shape[0]
    plan = _plan_tiling(n, flat.dtype.itemsize)
    if plan is None:
        return _clamp_jnp(flat, v_l, quantized).reshape(x.shape)

    cols, block_rows = plan
    block_elems = block_rows * cols
    n_blocks = n // block_elems
    n_main = n_blocks * block_elems

    main2d = flat[:n_main].reshape(n_blocks * block_rows, cols)
    out_main = _saturate_blocks(main2d, v_l, quantized,
                                block_rows, cols).reshape(-1)
    if n_main == n:
        out = out_main
    else:
        # Sub-block tail (< one block): plain VPU clamp, no padding copy.
        out_tail = _clamp_jnp(flat[n_main:], v_l, quantized)
        out = jnp.concatenate([out_main, out_tail])
    return out.reshape(x.shape)


class QSaturate:
    """JAX/Pallas port of hnn.snn.saturate.QSaturate (forward only)."""

    def __init__(self, v_l):
        self.v_l = v_l
        self.scale = None
        self.first_time = True
        self.pretrained = False
        self.freeze = False
        self.quantization_mode = False
        self.aware_mode = False

    def _quantize(self, scale):
        if self.first_time:
            self.first_time = False
            if not self.pretrained and not self.freeze:
                # Host-side, one-time rounding (stays outside the jitted fn;
                # v_l is then passed as a static scalar).
                self.v_l = round(self.v_l * float(scale))

    def __call__(self, x, scale):
        self.scale = scale
        if self.quantization_mode:
            self._quantize(scale)
        if self.aware_mode:
            # TODO(synk): FakeQuantizeINT28 (QAT fake-quant STE) not ported;
            # only the inference / quantized forward paths are implemented.
            raise NotImplementedError
        return _saturate_forward(x, self.v_l, bool(self.quantization_mode))


if __name__ == "__main__":
    key = jax.random.PRNGKey(0)
    k0, k1, k2 = jax.random.split(key, 3)

    # Small NCHW input (block-aligned: 2*4*16*16 = 2048 elems -> pure kernel).
    x = jax.random.normal(k0, (2, 4, 16, 16), dtype=jnp.float32) * 2.0
    scale = jnp.asarray(8.0, dtype=jnp.float32)
    v_l = -0.5

    mod = QSaturate(v_l)
    out = jax.block_until_ready(mod(x, scale))
    ref = jnp.maximum(x, v_l)
    assert out.shape == x.shape and out.dtype == x.dtype
    assert jnp.allclose(out, ref), "mismatch vs reference clamp"

    # Quantization-mode path: v_l -> round(v_l * scale), extra INT28 clip.
    mod_q = QSaturate(v_l)
    mod_q.quantization_mode = True
    out_q = jax.block_until_ready(mod_q(x * 1e9, scale))
    v_l_q = round(v_l * float(scale))
    ref_q = jnp.clip(jnp.maximum(x * 1e9, v_l_q), _INT28_MIN, _INT28_MAX)
    assert jnp.allclose(out_q, ref_q), "mismatch vs quantized reference"

    # Unaligned element count (3*5*7*11 = 1155): kernel prefix + jnp tail.
    x_odd = jax.random.normal(k1, (3, 5, 7, 11), dtype=jnp.float32)
    out_odd = jax.block_until_ready(QSaturate(v_l)(x_odd, scale))
    assert jnp.allclose(out_odd, jnp.maximum(x_odd, v_l)), "tail path mismatch"

    # Moderate size exercising the wide (cols=1024) lane-dense tiling.
    x_big = jax.random.normal(k2, (4, 16, 32, 32), dtype=jnp.float32)
    out_big = jax.block_until_ready(QSaturate(v_l)(x_big, scale))
    assert jnp.allclose(out_big, jnp.maximum(x_big, v_l)), "wide-tile mismatch"

    print("KERNEL_OK")
</pallas_src>

<mosaic_0001>
module attributes {stable_mosaic.version = 11 : i64} {
  func.func @_saturate_kernel(%arg0: i32, %arg1: memref<8x128xf32, #tpu.memory_space<vmem>>, %arg2: memref<8x128xf32, #tpu.memory_space<vmem>>) attributes {dimension_semantics = [#tpu.dimension_semantics<parallel>], iteration_bounds = array<i64: 2>, scalar_prefetch = 0 : i64, scratch_operands = 0 : i64, tpu.core_type = #tpu.core_type<tc>, window_params = [{transform_indices = @transform_0, window_bounds = array<i64: 8, 128>}, {transform_indices = @transform_1, window_bounds = array<i64: 8, 128>}]} {
    %c0 = arith.constant 0 : index
    %c0_0 = arith.constant 0 : index
    %0 = vector.load %arg1[%c0, %c0_0] : memref<8x128xf32, #tpu.memory_space<vmem>>, vector<8x128xf32>
    %cst = arith.constant -5.000000e-01 : f32
    %1 = vector.broadcast %cst : f32 to vector<8x128xf32>
    %2 = arith.maximumf %0, %1 : vector<8x128xf32>
    %c0_1 = arith.constant 0 : index
    %c0_2 = arith.constant 0 : index
    %3 = vector.load %arg2[%c0_1, %c0_2] : memref<8x128xf32, #tpu.memory_space<vmem>>, vector<8x128xf32>
    tpu.vector_store %arg2[%c0_1, %c0_2], %2 {strides = array<i32>} : memref<8x128xf32, #tpu.memory_space<vmem>>, vector<8x128xf32>,
    return
  }
  func.func @transform_0(%arg0: i32) -> (i32, i32) {
    %c0_i32 = arith.constant 0 : i32
    %c0_i32_0 = arith.constant 0 : i32
    return %arg0, %c0_i32 : i32, i32
  }
  func.func @transform_1(%arg0: i32) -> (i32, i32) {
    %c0_i32 = arith.constant 0 : i32
    %c0_i32_0 = arith.constant 0 : i32
    return %arg0, %c0_i32 : i32, i32
  }
}

</mosaic_0001>

<llo_original>
// kernel: _saturate_forward.1
$region0: #{_saturate_forward.1}
  #allocation0 [shape = 'u32[]', space=smem, size = 0x4, offset = 0x4, fixed_abs, tag = 'smem constant byte address 0x4 - core index']
  #allocation1 [shape = 'u32[144,128]{1,0:T(1,128)}', space=vmem, size = 0x12000, scoped, tag = 'internal scratch']
  %s0 = inlined_call_operand.vmem [shape: f32[16,128], index: 0, kind: input, shape index: {}]
  %s1 = inlined_call_operand.vmem [shape: f32[16,128], index: 1, kind: output, shape index: {}]
  %s2 = sld [smem:[#allocation0]]
  $region37: #{_saturate_forward.1} parent=0
    _
  %s4 = ssub.s32 1, %s2
  %s5 = scalar_select 0, %s4, %s2
  loop: start=0, step=1, limit=4
  $region2: #{_saturate_forward.1} parent=0 // loop_pre_header
    _
  $region3: #{_saturate_forward.1} parent=0 // loop_header
    %s7 = sphi 0, %s11
    %p8 = scmp.ge.s32.totalorder %s7, 4
    %s17 = sphi 0, %s19
    %s20 = sphi 0, %s17
    %s21 = sphi 0, %s20
    %s37 = sphi 0, %s21
    %s43 = sphi 0, %s45
    %s46 = sphi 0, %s43
    %s47 = sphi 0, %s46
    %s63 = sphi 0, %s47
  $region4: #{_saturate_forward.1} parent=0 // loop_header_branch
    %10 = sbr.rel (%p8) target = $region8
  $region5: #{_saturate_forward.1} parent=0 // loop_body
    %s12 = ssub.s32 %s7, 1
    %s13 = ssub.s32 %s7, 2
    %s14 = sadd.s32 %s7, 1
    %s15 = ssub.s32 %s7, %s14
    %p16 = scmp.eq.s32.totalorder %s15, 0
    %s18 = sadd.s32 %s17, 1
    %s19 = scalar_select %p16, %s17, %s18
    %p22 = pneg %p16
    %p23 = scmp.eq.s32.totalorder %s7, 1
    %p24 = por %p22, %p23
    %p25 = scmp.ne.s32.totalorder %s17, %s20
    %p26 = scmp.eq.s32.totalorder %s7, 0
    %p27 = por %p25, %p26
    %p28 = scmp.ne.s32.totalorder %s17, %s20
    %p29 = scmp.eq.s32.totalorder %s12, 1
    %p30 = por %p28, %p29
    %p31 = scmp.ne.s32.totalorder %s20, %s21
    %p32 = scmp.eq.s32.totalorder %s12, 0
    %p33 = por %p31, %p32
    %p34 = scmp.ne.s32.totalorder %s20, %s21
    %p35 = scmp.eq.s32.totalorder %s13, 1
    %p36 = por %p34, %p35
    %p38 = scmp.ne.s32.totalorder %s21, %s37
    %p39 = scmp.eq.s32.totalorder %s13, 0
    %p40 = por %p38, %p39
    %s41 = ssub.s32 %s7, %s14
    %p42 = scmp.eq.s32.totalorder %s41, 0
    %s44 = sadd.s32 %s43, 1
    %s45 = scalar_select %p42, %s43, %s44
    %p48 = pneg %p42
    %p49 = scmp.eq.s32.totalorder %s7, 1
    %p50 = por %p48, %p49
    %p51 = scmp.ne.s32.totalorder %s43, %s46
    %p52 = scmp.eq.s32.totalorder %s7, 0
    %p53 = por %p51, %p52
    %p54 = scmp.ne.s32.totalorder %s43, %s46
    %p55 = scmp.eq.s32.totalorder %s12, 1
    %p56 = por %p54, %p55
    %p57 = scmp.ne.s32.totalorder %s46, %s47
    %p58 = scmp.eq.s32.totalorder %s12, 0
    %p59 = por %p57, %p58
    %p60 = scmp.ne.s32.totalorder %s46, %s47
    %p61 = scmp.eq.s32.totalorder %s13, 1
    %p62 = por %p60, %p61
    %p64 = scmp.ne.s32.totalorder %s47, %s63
    %p65 = scmp.eq.s32.totalorder %s13, 0
    %p66 = por %p64, %p65
    %p67 = scmp.le.s32.totalorder 1, %s7
    %p68 = scmp.lt.s32.totalorder %s7, 3
    %p69 = pnand %p67, %p68
    %p70 = pneg %p69
    // Predicated region
    $region9: #{_saturate_forward.1} parent=5 // pred_check
      _
    $region10: #{_saturate_forward.1} parent=5 // pred_check_branch
      %72 = sbr.rel (%p69) target = $region12
    $region11: #{_saturate_forward.1} parent=5 // pred_region
      %s73 = ssub.s32 %s7, 1
    $region12: #{_saturate_forward.1} parent=5 // pred_fallthru
      _
    %p74 = scmp.lt.s32.totalorder %s7, 2
    // Predicated region
    $region13: #{_saturate_forward.1} parent=5 // pred_check
      %p75 = pneg %p74
    $region14: #{_saturate_forward.1} parent=5 // pred_check_branch
      %77 = sbr.rel (%p75) target = $region16
    $region15: #{_saturate_forward.1} parent=5 // pred_region
      // Predicated region
      $region17: #{_saturate_forward.1} parent=15 // pred_check
        %p78 = pneg %p27
      $region18: #{_saturate_forward.1} parent=15 // pred_check_branch
        %80 = sbr.rel (%p78) target = $region20
      $region19: #{_saturate_forward.1} parent=15 // pred_region
        %p81 = scmp.lt.s32.totalorder %s7, 1
        %s82 = scalar_select %p81, %s7, 1
        %s83 = smul.addr %s82, 8
        %s84 = scalar_lea.vmem %s0, %s83
      $region20: #{_saturate_forward.1} parent=15 // pred_fallthru
        _
    $region16: #{_saturate_forward.1} parent=5 // pred_fallthru
      _
    %p85 = scmp.le.s32.totalorder 1, %s7
    %p86 = scmp.lt.s32.totalorder %s7, 3
    %p87 = pnand %p85, %p86
    %p88 = pneg %p87
    // Predicated region
    $region21: #{_saturate_forward.1} parent=5 // pred_check
      _
    $region22: #{_saturate_forward.1} parent=5 // pred_check_branch
      %90 = sbr.rel (%p87) target = $region24
    $region23: #{_saturate_forward.1} parent=5 // pred_region
      %s91 = ssub.s32 %s7, 1
      %p92 = scmp.lt.s32.totalorder %s12, 1
      %s93 = scalar_select %p92, %s12, 1
      %s94 = smul.addr %s93, 8
      %s95 = scalar_lea.vmem %s0, %s94
      %p96 = pneg %p33
      %p97 = pneg %p30
      %p98 = pneg %p59
      %p99 = pneg %p56
      %p100 = scmp.lt.s32.totalorder %s12, 1
      %s101 = scalar_select %p100, %s12, 1
      %s102 = smul.addr %s101, 8
      %s103 = scalar_lea.vmem %s1, %s102
      %p104 = scmp.lt.s32.totalorder %s12, 1
      %s105 = scalar_select %p104, %s12, 1
      %s106 = smul.addr %s105, 8
      %s107 = scalar_lea.vmem %s0, %s106
      %p108 = scmp.lt.s32.totalorder %s12, 1
      %s109 = scalar_select %p108, %s12, 1
      %s110 = smul.addr %s109, 8
      %s111 = scalar_lea.vmem %s1, %s110
      %v112 = vld [vmem:[%s107] sm:$0xff]
      %v113 = vmax.f32 %v112, -0.5
      %114 = vst [vmem:[%s111] sm:$0xff] %v113
      %p115 = scmp.lt.s32.totalorder %s12, 1
      %s116 = scalar_select %p115, %s12, 1
      %s117 = smul.addr %s116, 8
      %s118 = scalar_lea.vmem %s1, %s117
      // Predicated region
      $region25: #{_saturate_forward.1} parent=23 // pred_check
        %p119 = pneg %p56
      $region26: #{_saturate_forward.1} parent=23 // pred_check_branch
        %121 = sbr.rel (%p119) target = $region28
      $region27: #{_saturate_forward.1} parent=23 // pred_region
        _
      $region28: #{_saturate_forward.1} parent=23 // pred_fallthru
        _
    $region24: #{_saturate_forward.1} parent=5 // pred_fallthru
      _
    %p122 = scmp.le.s32.totalorder 2, %s7
    // Predicated region
    $region29: #{_saturate_forward.1} parent=5 // pred_check
      %p123 = pneg %p122
    $region30: #{_saturate_forward.1} parent=5 // pred_check_branch
      %125 = sbr.rel (%p123) target = $region32
    $region31: #{_saturate_forward.1} parent=5 // pred_region
      %s126 = ssub.s32 %s7, 2
      // Predicated region
      $region33: #{_saturate_forward.1} parent=31 // pred_check
        %p127 = pneg %p62
      $region34: #{_saturate_forward.1} parent=31 // pred_check_branch
        %129 = sbr.rel (%p127) target = $region36
      $region35: #{_saturate_forward.1} parent=31 // pred_region
        %p130 = scmp.lt.s32.totalorder %s13, 1
        %s131 = scalar_select %p130, %s13, 1
        %s132 = smul.addr %s131, 8
        %s133 = scalar_lea.vmem %s1, %s132
      $region36: #{_saturate_forward.1} parent=31 // pred_fallthru
        _
    $region32: #{_saturate_forward.1} parent=5 // pred_fallthru
      _
  $region6: #{_saturate_forward.1} parent=0 // loop_footer
    %s11 = sadd.s32 1, %s7
  $region7: #{_saturate_forward.1} parent=0 // loop_footer_branch
    %6 = sbr.rel target = $region3
  $region8: #{_saturate_forward.1} parent=0 // loop_exit
    _

</llo_original>
